<compile_context>
chip_gen: v5e
topology: v5e:2x2
jax: 0.10.0
libtpu: 0.0.40
codegen_flags: <defaults>
</compile_context>

<pallas_src>
import jax
import jax.numpy as jnp
from jax.experimental import pallas as pl
from jax.experimental.pallas import tpu as pltpu


# --------------------------------------------------------------------------
# Pass 1: low-rank projections  q = x @ Wq + bq,  k = x @ Wk + bk
# --------------------------------------------------------------------------
def _project_kernel(x_ref, wq_ref, wk_ref, bq_ref, bk_ref, q_ref, k_ref):
    """x_ref: (1, ts, H); wq/wk: (H, r); bq/bk: (1, r); q/k out: (1, ts, r)."""
    x = x_ref[0]  # (ts, H)
    q = jnp.dot(x, wq_ref[...], preferred_element_type=jnp.float32) + bq_ref[...]
    k = jnp.dot(x, wk_ref[...], preferred_element_type=jnp.float32) + bk_ref[...]
    q_ref[0] = q.astype(q_ref.dtype)
    k_ref[0] = k.astype(k_ref.dtype)


# --------------------------------------------------------------------------
# Pass 2: approx_score = sigmoid(q @ k^T), one lane-dense (tq, tk) block/step
# --------------------------------------------------------------------------
def _score_kernel(q_ref, kT_ref, o_ref):
    """q_ref: (1, tq, r); kT_ref: (1, r, tk); o_ref: (1, tq, tk)."""
    scores = jnp.dot(q_ref[0], kT_ref[0], preferred_element_type=jnp.float32)
    # sigmoid(x) == 0.5 * tanh(0.5 * x) + 0.5  -> 1 EUP op/element (vs exp+div).
    o_ref[0] = (0.5 * jnp.tanh(0.5 * scores) + 0.5).astype(o_ref.dtype)


# --------------------------------------------------------------------------
# Wrapper
# --------------------------------------------------------------------------
def _vmem_budget():
    """Per-TensorCore VMEM capacity with headroom (v7x floor if query fails)."""
    try:
        cap = int(pltpu.get_tpu_info().vmem_capacity_bytes)
    except Exception:
        cap = 64 * 1024 * 1024  # v7x per-TC capacity; safe floor everywhere
    vmem_limit = max(32 << 20, min((cap * 7) // 8, 128 << 20))
    working_budget = (vmem_limit * 3) // 4
    return vmem_limit, working_budget


def attention_predictor(x, wq, bq, wk, bk, *, out_dtype=jnp.float32):
    """x: (B, S, H), wq/wk: (H, r) (transpose of nn.Linear.weight), bq/bk: (r,).

    Returns sigmoid((x@wq+bq) @ (x@wk+bk)^T) with shape (B, S, S).
    """
    B, S, H = x.shape
    r = wq.shape[1]
    x_bytes = jnp.dtype(x.dtype).itemsize
    o_bytes = jnp.dtype(out_dtype).itemsize

    vmem_limit, budget = _vmem_budget()

    # Pad S to a multiple of 128 so the output lane axis gives unmasked vst.
    S_p = ((S + 127) // 128) * 128
    x_p = jnp.pad(x, ((0, 0), (0, S_p - S), (0, 0))) if S_p != S else x

    bq2 = bq.reshape(1, r)
    bk2 = bk.reshape(1, r)

    # ---------------- Pass 1: projections (streams x once) ----------------
    # ts: largest row tile whose double-buffered footprint fits the budget.
    ts = 8  # always divides S_p (multiple of 128)
    for c in (1024, 512, 256, 128, 64, 32, 16, 8):
        if c <= S_p and S_p % c == 0:
            need = (2 * c * H * x_bytes            # x block, double-buffered
                    + 2 * 2 * c * 128 * 4          # q,k out blocks (lane-padded)
                    + 2 * 2 * H * 128 * 4          # wq,wk (lane-padded)
                    + 4 * 8 * 128 * 4)             # biases
            if need <= budget:
                ts = c
                break

    q, k = pl.pallas_call(
        _project_kernel,
        out_shape=(jax.ShapeDtypeStruct((B, S_p, r), jnp.float32),
                   jax.ShapeDtypeStruct((B, S_p, r), jnp.float32)),
        grid_spec=pltpu.PrefetchScalarGridSpec(
            num_scalar_prefetch=0,
            grid=(B, S_p // ts),
            in_specs=[
                pl.BlockSpec((1, ts, H), lambda b, i: (b, i, 0)),  # x rows
                pl.BlockSpec((H, r), lambda b, i: (0, 0)),         # wq
                pl.BlockSpec((H, r), lambda b, i: (0, 0)),         # wk
                pl.BlockSpec((1, r), lambda b, i: (0, 0)),         # bq
                pl.BlockSpec((1, r), lambda b, i: (0, 0)),         # bk
            ],
            out_specs=[
                pl.BlockSpec((1, ts, r), lambda b, i: (b, i, 0)),
                pl.BlockSpec((1, ts, r), lambda b, i: (b, i, 0)),
            ],
        ),
        compiler_params=pltpu.CompilerParams(
            dimension_semantics=("parallel", "parallel"),
            vmem_limit_bytes=vmem_limit,
        ),
        cost_estimate=pl.CostEstimate(
            flops=4 * B * S_p * H * r,
            transcendentals=0,
            bytes_accessed=B * S_p * H * x_bytes + 2 * B * S_p * r * 4 + 2 * H * r * 4,
        ),
    )(x_p, wq, wk, bq2, bk2)

    # k pre-transposed once (tiny array) so pass 2 is a canonical (tq,r)x(r,tk).
    kT = jnp.swapaxes(k, 1, 2)  # (B, r, S_p)

    # ---------------- Pass 2: score tiles --------------------------------
    # tk: large multiple of 128 dividing S_p (unmasked stores).
    tk = 128
    for c in (2048, 1024, 512, 256, 128):
        if c <= S_p and S_p % c == 0:
            tk = c
            break

    # tq: multiple of 8 (16 for packed bf16 output), sized against VMEM budget.
    sub = 16 if o_bytes < 4 else 8
    tq = sub
    for c in (1024, 512, 256, 128, 64, 32, 16, 8):
        if c % sub != 0 or c > S_p or S_p % c != 0:
            continue
        need = (2 * c * tk * o_bytes        # output block, double-buffered
                + 2 * c * 128 * 4           # q block (lane-padded to 128)
                + 2 * 8 * tk * 4)           # kT block (sublane-padded to 8)
        if need <= budget:
            tq = c
            break

    grid = (B, S_p // tq, S_p // tk)
    n_tiles = B * (S_p // tq) * (S_p // tk)

    out = pl.pallas_call(
        _score_kernel,
        out_shape=jax.ShapeDtypeStruct((B, S_p, S_p), out_dtype),
        grid_spec=pltpu.PrefetchScalarGridSpec(
            num_scalar_prefetch=0,
            grid=grid,
            in_specs=[
                pl.BlockSpec((1, tq, r), lambda b, i, j: (b, i, 0)),  # q rows
                pl.BlockSpec((1, r, tk), lambda b, i, j: (b, 0, j)),  # kT cols
            ],
            out_specs=pl.BlockSpec((1, tq, tk), lambda b, i, j: (b, i, j)),
        ),
        compiler_params=pltpu.CompilerParams(
            # No cross-iteration state: every grid axis is independent.
            dimension_semantics=("parallel", "parallel", "parallel"),
            vmem_limit_bytes=vmem_limit,
        ),
        cost_estimate=pl.CostEstimate(
            flops=2 * B * S_p * S_p * r + 3 * B * S_p * S_p,
            transcendentals=B * S_p * S_p,  # one tanh per element
            bytes_accessed=n_tiles * (tq * r + r * tk) * 4 + B * S_p * S_p * o_bytes,
        ),
    )(q, kT)

    if S_p != S:
        out = out[:, :S, :S]
    return out


def _reference(x, wq, bq, wk, bk):
    q = x @ wq + bq
    k = x @ wk + bk
    return jax.nn.sigmoid(jnp.einsum("bsr,btr->bst", q, k))


if __name__ == "__main__":
    # Small shapes consistent with the module's forward: (B, S, hidden_dim).
    B, S, H, R = 2, 8, 32, 4

    key = jax.random.PRNGKey(0)
    kx, kwq, kbq, kwk, kbk = jax.random.split(key, 5)

    x = jax.random.normal(kx, (B, S, H), dtype=jnp.float32)

    # nn.Linear(hidden_dim, r): weight (r, H) -> stored transposed as (H, r); bias (r,).
    bound = 1.0 / jnp.sqrt(H)
    wq = jax.random.uniform(kwq, (H, R), dtype=jnp.float32, minval=-bound, maxval=bound)
    bq = jax.random.uniform(kbq, (R,), dtype=jnp.float32, minval=-bound, maxval=bound)
    wk = jax.random.uniform(kwk, (H, R), dtype=jnp.float32, minval=-bound, maxval=bound)
    bk = jax.random.uniform(kbk, (R,), dtype=jnp.float32, minval=-bound, maxval=bound)

    out = attention_predictor(x, wq, bq, wk, bk)
    out = jax.block_until_ready(out)

    ref = _reference(x, wq, bq, wk, bk)
    assert out.shape == (B, S, S), out.shape
    assert jnp.allclose(out, ref, atol=1e-5, rtol=1e-5), "mismatch vs reference"

    print("KERNEL_OK")
</pallas_src>

<mosaic_0001>
module attributes {stable_mosaic.version = 11 : i64} {
  func.func @_project_kernel(%arg0: i32, %arg1: i32, %arg2: memref<1x128x32xf32, #tpu.memory_space<vmem>>, %arg3: memref<32x4xf32, #tpu.memory_space<vmem>>, %arg4: memref<32x4xf32, #tpu.memory_space<vmem>>, %arg5: memref<1x4xf32, #tpu.memory_space<vmem>>, %arg6: memref<1x4xf32, #tpu.memory_space<vmem>>, %arg7: memref<1x128x4xf32, #tpu.memory_space<vmem>>, %arg8: memref<1x128x4xf32, #tpu.memory_space<vmem>>) attributes {dimension_semantics = [#tpu.dimension_semantics<parallel>, #tpu.dimension_semantics<parallel>], iteration_bounds = array<i64: 2, 1>, scalar_prefetch = 0 : i64, scratch_operands = 0 : i64, tpu.core_type = #tpu.core_type<tc>, window_params = [{transform_indices = @transform_0, window_bounds = array<i64: 1, 128, 32>}, {pipeline_mode = #tpu.pipeline_mode<synchronous>, transform_indices = @transform_1, window_bounds = array<i64: 32, 4>}, {pipeline_mode = #tpu.pipeline_mode<synchronous>, transform_indices = @transform_2, window_bounds = array<i64: 32, 4>}, {pipeline_mode = #tpu.pipeline_mode<synchronous>, transform_indices = @transform_3, window_bounds = array<i64: 1, 4>}, {pipeline_mode = #tpu.pipeline_mode<synchronous>, transform_indices = @transform_4, window_bounds = array<i64: 1, 4>}, {transform_indices = @transform_5, window_bounds = array<i64: 1, 128, 4>}, {transform_indices = @transform_6, window_bounds = array<i64: 1, 128, 4>}]} {
    %c0 = arith.constant 0 : index
    %c0_0 = arith.constant 0 : index
    %c0_1 = arith.constant 0 : index
    %0 = vector.load %arg2[%c0, %c0_0, %c0_1] : memref<1x128x32xf32, #tpu.memory_space<vmem>>, vector<1x128x32xf32>
    %1 = vector.shape_cast %0 : vector<1x128x32xf32> to vector<128x32xf32>
    %c0_2 = arith.constant 0 : index
    %c0_3 = arith.constant 0 : index
    %2 = vector.load %arg3[%c0_2, %c0_3] : memref<32x4xf32, #tpu.memory_space<vmem>>, vector<32x4xf32>
    %cst = arith.constant dense<0.000000e+00> : vector<128x4xf32>
    %3 = tpu.matmul %1, %2, %cst {dimension_numbers = #tpu.dot_dimension_numbers<[1], [0], [0], [1], [0, 0, 1, 1], [], []>} : vector<128x32xf32>, vector<32x4xf32>, vector<128x4xf32> -> vector<128x4xf32>
    %c0_4 = arith.constant 0 : index
    %c0_5 = arith.constant 0 : index
    %4 = vector.load %arg5[%c0_4, %c0_5] : memref<1x4xf32, #tpu.memory_space<vmem>>, vector<1x4xf32>
    %5 = vector.broadcast %4 : vector<1x4xf32> to vector<128x4xf32>
    %6 = arith.addf %3, %5 : vector<128x4xf32>
    %c0_6 = arith.constant 0 : index
    %c0_7 = arith.constant 0 : index
    %7 = vector.load %arg4[%c0_6, %c0_7] : memref<32x4xf32, #tpu.memory_space<vmem>>, vector<32x4xf32>
    %cst_8 = arith.constant dense<0.000000e+00> : vector<128x4xf32>
    %8 = tpu.matmul %1, %7, %cst_8 {dimension_numbers = #tpu.dot_dimension_numbers<[1], [0], [0], [1], [0, 0, 1, 1], [], []>} : vector<128x32xf32>, vector<32x4xf32>, vector<128x4xf32> -> vector<128x4xf32>
    %c0_9 = arith.constant 0 : index
    %c0_10 = arith.constant 0 : index
    %9 = vector.load %arg6[%c0_9, %c0_10] : memref<1x4xf32, #tpu.memory_space<vmem>>, vector<1x4xf32>
    %10 = vector.broadcast %9 : vector<1x4xf32> to vector<128x4xf32>
    %11 = arith.addf %8, %10 : vector<128x4xf32>
    %c0_11 = arith.constant 0 : index
    %c0_12 = arith.constant 0 : index
    %c0_13 = arith.constant 0 : index
    %12 = vector.load %arg7[%c0_11, %c0_12, %c0_13] : memref<1x128x4xf32, #tpu.memory_space<vmem>>, vector<1x128x4xf32>
    %13 = vector.shape_cast %12 : vector<1x128x4xf32> to vector<128x4xf32>
    %14 = vector.shape_cast %6 : vector<128x4xf32> to vector<1x128x4xf32>
    tpu.vector_store %arg7[%c0_11, %c0_12, %c0_13], %14 {strides = array<i32>} : memref<1x128x4xf32, #tpu.memory_space<vmem>>, vector<1x128x4xf32>,
    %c0_14 = arith.constant 0 : index
    %c0_15 = arith.constant 0 : index
    %c0_16 = arith.constant 0 : index
    %15 = vector.load %arg8[%c0_14, %c0_15, %c0_16] : memref<1x128x4xf32, #tpu.memory_space<vmem>>, vector<1x128x4xf32>
    %16 = vector.shape_cast %15 : vector<1x128x4xf32> to vector<128x4xf32>
    %17 = vector.shape_cast %11 : vector<128x4xf32> to vector<1x128x4xf32>
    tpu.vector_store %arg8[%c0_14, %c0_15, %c0_16], %17 {strides = array<i32>} : memref<1x128x4xf32, #tpu.memory_space<vmem>>, vector<1x128x4xf32>,
    return
  }
  func.func @transform_0(%arg0: i32, %arg1: i32) -> (i32, i32, i32) {
    %c0_i32 = arith.constant 0 : i32
    %c0_i32_0 = arith.constant 0 : i32
    return %arg0, %arg1, %c0_i32 : i32, i32, i32
  }
  func.func @transform_1(%arg0: i32, %arg1: i32) -> (i32, i32) {
    %c0_i32 = arith.constant 0 : i32
    %c0_i32_0 = arith.constant 0 : i32
    %c0_i32_1 = arith.constant 0 : i32
    return %c0_i32, %c0_i32_0 : i32, i32
  }
  func.func @transform_2(%arg0: i32, %arg1: i32) -> (i32, i32) {
    %c0_i32 = arith.constant 0 : i32
    %c0_i32_0 = arith.constant 0 : i32
    %c0_i32_1 = arith.constant 0 : i32
    return %c0_i32, %c0_i32_0 : i32, i32
  }
  func.func @transform_3(%arg0: i32, %arg1: i32) -> (i32, i32) {
    %c0_i32 = arith.constant 0 : i32
    %c0_i32_0 = arith.constant 0 : i32
    %c0_i32_1 = arith.constant 0 : i32
    return %c0_i32, %c0_i32_0 : i32, i32
  }
  func.func @transform_4(%arg0: i32, %arg1: i32) -> (i32, i32) {
    %c0_i32 = arith.constant 0 : i32
    %c0_i32_0 = arith.constant 0 : i32
    %c0_i32_1 = arith.constant 0 : i32
    return %c0_i32, %c0_i32_0 : i32, i32
  }
  func.func @transform_5(%arg0: i32, %arg1: i32) -> (i32, i32, i32) {
    %c0_i32 = arith.constant 0 : i32
    %c0_i32_0 = arith.constant 0 : i32
    return %arg0, %arg1, %c0_i32 : i32, i32, i32
  }
  func.func @transform_6(%arg0: i32, %arg1: i32) -> (i32, i32, i32) {
    %c0_i32 = arith.constant 0 : i32
    %c0_i32_0 = arith.constant 0 : i32
    return %arg0, %arg1, %c0_i32 : i32, i32, i32
  }
}

</mosaic_0001>

<llo_original>
// kernel: tpu_custom_call.1
$region0: #{tpu_custom_call.1}
  #allocation0 [shape = 'u32[]', space=smem, size = 0x4, offset = 0x4, fixed_abs, tag = 'smem constant byte address 0x4 - core index']
  #allocation1 [shape = 'u32[72,128]{1,0:T(1,128)}', space=vmem, size = 0x9000, scoped, tag = 'internal scratch']
  %s0 = inlined_call_operand.vmem [shape: f32[2,128,32], index: 0, kind: input, shape index: {}]
  %s1 = inlined_call_operand.vmem [shape: f32[32,4], index: 1, kind: input, shape index: {}]
  %s2 = inlined_call_operand.vmem [shape: f32[32,4], index: 2, kind: input, shape index: {}]
  %s3 = inlined_call_operand.vmem [shape: f32[1,4], index: 3, kind: input, shape index: {}]
  %s4 = inlined_call_operand.vmem [shape: f32[1,4], index: 4, kind: input, shape index: {}]
  %s5 = inlined_call_operand.vmem [shape: f32[2,128,4], index: 5, kind: output, shape index: {0}]
  %s6 = inlined_call_operand.vmem [shape: f32[2,128,4], index: 6, kind: output, shape index: {1}]
  %7 = xla_tuple %s5, %s6
  %s8 = sld [smem:[#allocation0]]
  $region61: #{tpu_custom_call.1} parent=0
    _
  %s10 = ssub.s32 1, %s8
  %s11 = scalar_select 0, %s10, %s8
  loop: start=0, step=1, limit=4
  $region2: #{tpu_custom_call.1} parent=0 // loop_pre_header
    _
  $region3: #{tpu_custom_call.1} parent=0 // loop_header
    %s13 = sphi 0, %s17
    %p14 = scmp.ge.s32.totalorder %s13, 4
    %s20 = sphi 0, %s32
    %s21 = sphi 0, %s28
    %s22 = sphi 0, %s20
    %s23 = sphi 0, %s21
    %s24 = sphi 0, %s22
    %s25 = sphi 0, %s23
    %s37 = sphi 0, %s39
    %s40 = sphi 0, %s37
    %s41 = sphi 0, %s40
    %s57 = sphi 0, %s41
    %s61 = sphi 0, %s61
    %s63 = sphi 0, %s61
    %s64 = sphi 0, %s63
    %s78 = sphi 0, %s64
    %s82 = sphi 0, %s82
    %s84 = sphi 0, %s82
    %s85 = sphi 0, %s84
    %s99 = sphi 0, %s85
    %s103 = sphi 0, %s103
    %s105 = sphi 0, %s103
    %s106 = sphi 0, %s105
    %s120 = sphi 0, %s106
    %s124 = sphi 0, %s124
    %s126 = sphi 0, %s124
    %s127 = sphi 0, %s126
    %s141 = sphi 0, %s127
    %s149 = sphi 0, %s151
    %s152 = sphi 0, %s149
    %s153 = sphi 0, %s152
    %s169 = sphi 0, %s153
    %s177 = sphi 0, %s179
    %s180 = sphi 0, %s177
    %s181 = sphi 0, %s180
    %s197 = sphi 0, %s181
  $region4: #{tpu_custom_call.1} parent=0 // loop_header_branch
    %16 = sbr.rel (%p14) target = $region8
  $region5: #{tpu_custom_call.1} parent=0 // loop_body
    %s18 = ssub.s32 %s13, 1
    %s19 = ssub.s32 %s13, 2
    %s26 = sadd.s32 1, %s21
    %p27 = scmp.ge.s32.totalorder %s26, 1
    %s28 = scalar_select %p27, 0, %s26
    %s29 = sadd.s32 1, %s20
    %s30 = scalar_select %p27, %s29, %s20
    %p31 = scmp.ge.s32.totalorder %s30, 2
    %s32 = scalar_select %p31, 0, %s30
    %s33 = ssub.s32 %s20, %s32
    %s34 = ssub.s32 %s21, %s28
    %s35 = sor.u32 %s33, %s34
    %p36 = scmp.eq.s32.totalorder %s35, 0
    %s38 = sadd.s32 %s37, 1
    %s39 = scalar_select %p36, %s37, %s38
    %p42 = pneg %p36
    %p43 = scmp.eq.s32.totalorder %s13, 1
    %p44 = por %p42, %p43
    %p45 = scmp.ne.s32.totalorder %s37, %s40
    %p46 = scmp.eq.s32.totalorder %s13, 0
    %p47 = por %p45, %p46
    %p48 = scmp.ne.s32.totalorder %s37, %s40
    %p49 = scmp.eq.s32.totalorder %s18, 1
    %p50 = por %p48, %p49
    %p51 = scmp.ne.s32.totalorder %s40, %s41
    %p52 = scmp.eq.s32.totalorder %s18, 0
    %p53 = por %p51, %p52
    %p54 = scmp.ne.s32.totalorder %s40, %s41
    %p55 = scmp.eq.s32.totalorder %s19, 1
    %p56 = por %p54, %p55
    %p58 = scmp.ne.s32.totalorder %s41, %s57
    %p59 = scmp.eq.s32.totalorder %s19, 0
    %p60 = por %p58, %p59
    %s62 = sadd.s32 %s61, 1
    %p65 = scmp.eq.s32.totalorder %s13, 1
    %p66 = scmp.ne.s32.totalorder %s61, %s63
    %p67 = scmp.eq.s32.totalorder %s13, 0
    %p68 = por %p66, %p67
    %p69 = scmp.ne.s32.totalorder %s61, %s63
    %p70 = scmp.eq.s32.totalorder %s18, 1
    %p71 = por %p69, %p70
    %p72 = scmp.ne.s32.totalorder %s63, %s64
    %p73 = scmp.eq.s32.totalorder %s18, 0
    %p74 = por %p72, %p73
    %p75 = scmp.ne.s32.totalorder %s63, %s64
    %p76 = scmp.eq.s32.totalorder %s19, 1
    %p77 = por %p75, %p76
    %p79 = scmp.ne.s32.totalorder %s64, %s78
    %p80 = scmp.eq.s32.totalorder %s19, 0
    %p81 = por %p79, %p80
    %s83 = sadd.s32 %s82, 1
    %p86 = scmp.eq.s32.totalorder %s13, 1
    %p87 = scmp.ne.s32.totalorder %s82, %s84
    %p88 = scmp.eq.s32.totalorder %s13, 0
    %p89 = por %p87, %p88
    %p90 = scmp.ne.s32.totalorder %s82, %s84
    %p91 = scmp.eq.s32.totalorder %s18, 1
    %p92 = por %p90, %p91
    %p93 = scmp.ne.s32.totalorder %s84, %s85
    %p94 = scmp.eq.s32.totalorder %s18, 0
    %p95 = por %p93, %p94
    %p96 = scmp.ne.s32.totalorder %s84, %s85
    %p97 = scmp.eq.s32.totalorder %s19, 1
    %p98 = por %p96, %p97
    %p100 = scmp.ne.s32.totalorder %s85, %s99
    %p101 = scmp.eq.s32.totalorder %s19, 0
    %p102 = por %p100, %p101
    %s104 = sadd.s32 %s103, 1
    %p107 = scmp.eq.s32.totalorder %s13, 1
    %p108 = scmp.ne.s32.totalorder %s103, %s105
    %p109 = scmp.eq.s32.totalorder %s13, 0
    %p110 = por %p108, %p109
    %p111 = scmp.ne.s32.totalorder %s103, %s105
    %p112 = scmp.eq.s32.totalorder %s18, 1
    %p113 = por %p111, %p112
    %p114 = scmp.ne.s32.totalorder %s105, %s106
    %p115 = scmp.eq.s32.totalorder %s18, 0
    %p116 = por %p114, %p115
    %p117 = scmp.ne.s32.totalorder %s105, %s106
    %p118 = scmp.eq.s32.totalorder %s19, 1
    %p119 = por %p117, %p118
    %p121 = scmp.ne.s32.totalorder %s106, %s120
    %p122 = scmp.eq.s32.totalorder %s19, 0
    %p123 = por %p121, %p122
    %s125 = sadd.s32 %s124, 1
    %p128 = scmp.eq.s32.totalorder %s13, 1
    %p129 = scmp.ne.s32.totalorder %s124, %s126
    %p130 = scmp.eq.s32.totalorder %s13, 0
    %p131 = por %p129, %p130
    %p132 = scmp.ne.s32.totalorder %s124, %s126
    %p133 = scmp.eq.s32.totalorder %s18, 1
    %p134 = por %p132, %p133
    %p135 = scmp.ne.s32.totalorder %s126, %s127
    %p136 = scmp.eq.s32.totalorder %s18, 0
    %p137 = por %p135, %p136
    %p138 = scmp.ne.s32.totalorder %s126, %s127
    %p139 = scmp.eq.s32.totalorder %s19, 1
    %p140 = por %p138, %p139
    %p142 = scmp.ne.s32.totalorder %s127, %s141
    %p143 = scmp.eq.s32.totalorder %s19, 0
    %p144 = por %p142, %p143
    %s145 = ssub.s32 %s20, %s32
    %s146 = ssub.s32 %s21, %s28
    %s147 = sor.u32 %s145, %s146
    %p148 = scmp.eq.s32.totalorder %s147, 0
    %s150 = sadd.s32 %s149, 1
    %s151 = scalar_select %p148, %s149, %s150
    %p154 = pneg %p148
    %p155 = scmp.eq.s32.totalorder %s13, 1
    %p156 = por %p154, %p155
    %p157 = scmp.ne.s32.totalorder %s149, %s152
    %p158 = scmp.eq.s32.totalorder %s13, 0
    %p159 = por %p157, %p158
    %p160 = scmp.ne.s32.totalorder %s149, %s152
    %p161 = scmp.eq.s32.totalorder %s18, 1
    %p162 = por %p160, %p161
    %p163 = scmp.ne.s32.totalorder %s152, %s153
    %p164 = scmp.eq.s32.totalorder %s18, 0
    %p165 = por %p163, %p164
    %p166 = scmp.ne.s32.totalorder %s152, %s153
    %p167 = scmp.eq.s32.totalorder %s19, 1
    %p168 = por %p166, %p167
    %p170 = scmp.ne.s32.totalorder %s153, %s169
    %p171 = scmp.eq.s32.totalorder %s19, 0
    %p172 = por %p170, %p171
    %s173 = ssub.s32 %s20, %s32
    %s174 = ssub.s32 %s21, %s28
    %s175 = sor.u32 %s173, %s174
    %p176 = scmp.eq.s32.totalorder %s175, 0
    %s178 = sadd.s32 %s177, 1
    %s179 = scalar_select %p176, %s177, %s178
    %p182 = pneg %p176
    %p183 = scmp.eq.s32.totalorder %s13, 1
    %p184 = por %p182, %p183
    %p185 = scmp.ne.s32.totalorder %s177, %s180
    %p186 = scmp.eq.s32.totalorder %s13, 0
    %p187 = por %p185, %p186
    %p188 = scmp.ne.s32.totalorder %s177, %s180
    %p189 = scmp.eq.s32.totalorder %s18, 1
    %p190 = por %p188, %p189
    %p191 = scmp.ne.s32.totalorder %s180, %s181
    %p192 = scmp.eq.s32.totalorder %s18, 0
    %p193 = por %p191, %p192
    %p194 = scmp.ne.s32.totalorder %s180, %s181
    %p195 = scmp.eq.s32.totalorder %s19, 1
    %p196 = por %p194, %p195
    %p198 = scmp.ne.s32.totalorder %s181, %s197
    %p199 = scmp.eq.s32.totalorder %s19, 0
    %p200 = por %p198, %p199
    %p201 = scmp.le.s32.totalorder 1, %s13
    %p202 = scmp.lt.s32.totalorder %s13, 3
    %p203 = pnand %p201, %p202
    %p204 = pneg %p203
    // Predicated region
    $region9: #{tpu_custom_call.1} parent=5 // pred_check
      _
    $region10: #{tpu_custom_call.1} parent=5 // pred_check_branch
      %206 = sbr.rel (%p203) target = $region12
    $region11: #{tpu_custom_call.1} parent=5 // pred_region
      %s207 = ssub.s32 %s13, 1
      // Predicated region
      $region13: #{tpu_custom_call.1} parent=11 // pred_check
        %p208 = pneg %p74
      $region14: #{tpu_custom_call.1} parent=11 // pred_check_branch
        %210 = sbr.rel (%p208) target = $region16
      $region15: #{tpu_custom_call.1} parent=11 // pred_region
        _
      $region16: #{tpu_custom_call.1} parent=11 // pred_fallthru
        _
      // Predicated region
      $region17: #{tpu_custom_call.1} parent=11 // pred_check
        %p211 = pneg %p95
      $region18: #{tpu_custom_call.1} parent=11 // pred_check_branch
        %213 = sbr.rel (%p211) target = $region20
      $region19: #{tpu_custom_call.1} parent=11 // pred_region
        _
      $region20: #{tpu_custom_call.1} parent=11 // pred_fallthru
        _
      // Predicated region
      $region21: #{tpu_custom_call.1} parent=11 // pred_check
        %p214 = pneg %p116
      $region22: #{tpu_custom_call.1} parent=11 // pred_check_branch
        %216 = sbr.rel (%p214) target = $region24
      $region23: #{tpu_custom_call.1} parent=11 // pred_region
        _
      $region24: #{tpu_custom_call.1} parent=11 // pred_fallthru
        _
      // Predicated region
      $region25: #{tpu_custom_call.1} parent=11 // pred_check
        %p217 = pneg %p137
      $region26: #{tpu_custom_call.1} parent=11 // pred_check_branch
        %219 = sbr.rel (%p217) target = $region28
      $region27: #{tpu_custom_call.1} parent=11 // pred_region
        _
      $region28: #{tpu_custom_call.1} parent=11 // pred_fallthru
        _
    $region12: #{tpu_custom_call.1} parent=5 // pred_fallthru
      _
    %p220 = scmp.lt.s32.totalorder %s13, 2
    // Predicated region
    $region29: #{tpu_custom_call.1} parent=5 // pred_check
      %p221 = pneg %p220
    $region30: #{tpu_custom_call.1} parent=5 // pred_check_branch
      %223 = sbr.rel (%p221) target = $region32
    $region31: #{tpu_custom_call.1} parent=5 // pred_region
      // Predicated region
      $region33: #{tpu_custom_call.1} parent=31 // pred_check
        %p224 = pneg %p47
      $region34: #{tpu_custom_call.1} parent=31 // pred_check_branch
        %226 = sbr.rel (%p224) target = $region36
      $region35: #{tpu_custom_call.1} parent=31 // pred_region
        %s227 = smul.u32 16, %s21
        %p228 = scmp.lt.s32.totalorder %s20, 1
        %s229 = scalar_select %p228, %s20, 1
        %p230 = scmp.lt.s32.totalorder %s227, 15
        %s231 = scalar_select %p230, %s227, 15
        %s232 = smul.addr %s229, 16
        %s233 = sadd.s32 %s231, %s232
        %s234 = smul.addr %s233, 8
        %s235 = scalar_lea.vmem %s0, %s234
        %s236 = smul.u32 16, %s21
      $region36: #{tpu_custom_call.1} parent=31 // pred_fallthru
        _
    $region32: #{tpu_custom_call.1} parent=5 // pred_fallthru
      _
    %p237 = scmp.le.s32.totalorder 1, %s13
    %p238 = scmp.lt.s32.totalorder %s13, 3
    %p239 = pnand %p237, %p238
    %p240 = pneg %p239
    // Predicated region
    $region37: #{tpu_custom_call.1} parent=5 // pred_check
      _
    $region38: #{tpu_custom_call.1} parent=5 // pred_check_branch
      %242 = sbr.rel (%p239) target = $region40
    $region39: #{tpu_custom_call.1} parent=5 // pred_region
      %s243 = ssub.s32 %s13, 1
      %s244 = smul.u32 16, %s23
      %p245 = scmp.lt.s32.totalorder %s22, 1
      %s246 = scalar_select %p245, %s22, 1
      %p247 = scmp.lt.s32.totalorder %s244, 15
      %s248 = scalar_select %p247, %s244, 15
      %s249 = smul.addr %s246, 16
      %s250 = sadd.s32 %s248, %s249
      %s251 = smul.addr %s250, 8
      %s252 = scalar_lea.vmem %s0, %s251
      %p253 = pneg %p53
      %p254 = pneg %p50
      %p255 = pneg %p74
      %p256 = pneg %p71
      %p257 = pneg %p95
      %p258 = pneg %p92
      %p259 = pneg %p116
      %p260 = pneg %p113
      %p261 = pneg %p137
      %p262 = pneg %p134
      %p263 = pneg %p165
      %p264 = pneg %p162
      %s265 = smul.u32 16, %s23
      %p266 = scmp.lt.s32.totalorder %s22, 1
      %s267 = scalar_select %p266, %s22, 1
      %p268 = scmp.lt.s32.totalorder %s265, 15
      %s269 = scalar_select %p268, %s265, 15
      %s270 = smul.addr %s267, 16
      %s271 = sadd.s32 %s269, %s270
      %s272 = smul.addr %s271, 8
      %s273 = scalar_lea.vmem %s5, %s272
      %p274 = pneg %p193
      %p275 = pneg %p190
      %s276 = smul.u32 16, %s23
      %p277 = scmp.lt.s32.totalorder %s22, 1
      %s278 = scalar_select %p277, %s22, 1
      %p279 = scmp.lt.s32.totalorder %s276, 15
      %s280 = scalar_select %p279, %s276, 15
      %s281 = smul.addr %s278, 16
      %s282 = sadd.s32 %s280, %s281
      %s283 = smul.addr %s282, 8
      %s284 = scalar_lea.vmem %s6, %s283
      %s285 = smul.u32 16, %s23
      %p286 = scmp.lt.s32.totalorder %s22, 1
      %s287 = scalar_select %p286, %s22, 1
      %p288 = scmp.lt.s32.totalorder %s285, 15
      %s289 = scalar_select %p288, %s285, 15
      %s290 = smul.addr %s287, 16
      %s291 = sadd.s32 %s289, %s290
      %s292 = smul.addr %s291, 8
      %s293 = scalar_lea.vmem %s0, %s292
      %s294 = smul.u32 16, %s23
      %s295 = smul.u32 16, %s23
      %p296 = scmp.lt.s32.totalorder %s22, 1
      %s297 = scalar_select %p296, %s22, 1
      %p298 = scmp.lt.s32.totalorder %s295, 15
      %s299 = scalar_select %p298, %s295, 15
      %s300 = smul.addr %s297, 16
      %s301 = sadd.s32 %s299, %s300
      %s302 = smul.addr %s301, 8
      %s303 = scalar_lea.vmem %s5, %s302
      %s304 = smul.u32 16, %s23
      %s305 = smul.u32 16, %s23
      %p306 = scmp.lt.s32.totalorder %s22, 1
      %s307 = scalar_select %p306, %s22, 1
      %p308 = scmp.lt.s32.totalorder %s305, 15
      %s309 = scalar_select %p308, %s305, 15
      %s310 = smul.addr %s307, 16
      %s311 = sadd.s32 %s309, %s310
      %s312 = smul.addr %s311, 8
      %s313 = scalar_lea.vmem %s6, %s312
      %s314 = smul.u32 16, %s23
      %v315 = vld [vmem:[%s293] sm:$0xff]
      %v316 = vld [vmem:[%s293 + $0x8] sm:$0xff]
      %v317 = vld [vmem:[%s293 + $0x10] sm:$0xff]
      %v318 = vld [vmem:[%s293 + $0x18] sm:$0xff]
      %v319 = vld [vmem:[%s293 + $0x20] sm:$0xff]
      %v320 = vld [vmem:[%s293 + $0x28] sm:$0xff]
      %v321 = vld [vmem:[%s293 + $0x30] sm:$0xff]
      %v322 = vld [vmem:[%s293 + $0x38] sm:$0xff]
      %v323 = vld [vmem:[%s293 + $0x40] sm:$0xff]
      %v324 = vld [vmem:[%s293 + $0x48] sm:$0xff]
      %v325 = vld [vmem:[%s293 + $0x50] sm:$0xff]
      %v326 = vld [vmem:[%s293 + $0x58] sm:$0xff]
      %v327 = vld [vmem:[%s293 + $0x60] sm:$0xff]
      %v328 = vld [vmem:[%s293 + $0x68] sm:$0xff]
      %v329 = vld [vmem:[%s293 + $0x70] sm:$0xff]
      %v330 = vld [vmem:[%s293 + $0x78] sm:$0xff]
      %v331 = vld [vmem:[%s1] sm:$0xff]
      %v332 = vld [vmem:[%s1 + $0x8] sm:$0xff]
      %v333 = vld [vmem:[%s1 + $0x10] sm:$0xff]
      %v334 = vld [vmem:[%s1 + $0x18] sm:$0xff]
      %v335 = vld [vmem:[%s3] sm:$0x1]
      %v337 = vperm.slane %v335, 0
      %vm339 = vcmask 261120
      %v341 = vsel %vm339, %v315, 0
      %v344 = vsel %vm339, %v316, 0
      %v347 = vsel %vm339, %v317, 0
      %v350 = vsel %vm339, %v318, 0
      %v353 = vsel %vm339, %v319, 0
      %v356 = vsel %vm339, %v320, 0
      %v359 = vsel %vm339, %v321, 0
      %v362 = vsel %vm339, %v322, 0
      %v365 = vsel %vm339, %v323, 0
      %v368 = vsel %vm339, %v324, 0
      %v371 = vsel %vm339, %v325, 0
      %v374 = vsel %vm339, %v326, 0
      %v377 = vsel %vm339, %v327, 0
      %v380 = vsel %vm339, %v328, 0
      %v383 = vsel %vm339, %v329, 0
      %v386 = vsel %vm339, %v330, 0
      %388 = vmatpush.msra.mxu0 0.0
      %389 = vmatpush.msra.mxu0 0.0
      %390 = vmatpush.msra.mxu0 0.0
      %391 = vmatpush.msra.mxu0 0.0
      %392 = vmatpush.msra.mxu0 0.0
      %393 = vmatpush.msra.mxu0 0.0
      %394 = vmatpush.msra.mxu0 0.0
      %395 = vmatpush.msra.mxu0 0.0
      %396 = vmatpush.msra.mxu0 0.0
      %397 = vmatpush.msra.mxu0 0.0
      %398 = vmatpush.msra.mxu0 0.0
      %399 = vmatpush.msra.mxu0 0.0
      %400 = vmatpush.msra.mxu0 %v334
      %401 = vmatpush.msra.mxu0 %v333
      %402 = vmatpush.msra.mxu0 %v332
      %403 = vmatpush.msra.mxu0 %v331
      %404 = vmatmul.f32.gmra.mxu0 %v341
      %v405 = vpop.f32.mrf.mxu0
      %v406 = vadd.f32 %v337, %v405
      %407 = vmatmul.f32.gmra.mxu0 %v344
      %v408 = vpop.f32.mrf.mxu0
      %v409 = vadd.f32 %v337, %v408
      %410 = vmatmul.f32.gmra.mxu0 %v347
      %v411 = vpop.f32.mrf.mxu0
      %v412 = vadd.f32 %v337, %v411
      %413 = vmatmul.f32.gmra.mxu0 %v350
      %v414 = vpop.f32.mrf.mxu0
      %v415 = vadd.f32 %v337, %v414
      %416 = vmatmul.f32.gmra.mxu0 %v353
      %v417 = vpop.f32.mrf.mxu0
      %v418 = vadd.f32 %v337, %v417
      %419 = vmatmul.f32.gmra.mxu0 %v356
      %v420 = vpop.f32.mrf.mxu0
      %v421 = vadd.f32 %v337, %v420
      %422 = vmatmul.f32.gmra.mxu0 %v359
      %v423 = vpop.f32.mrf.mxu0
      %v424 = vadd.f32 %v337, %v423
      %425 = vmatmul.f32.gmra.mxu0 %v362
      %v426 = vpop.f32.mrf.mxu0
      %v427 = vadd.f32 %v337, %v426
      %428 = vmatmul.f32.gmra.mxu0 %v365
      %v429 = vpop.f32.mrf.mxu0
      %v430 = vadd.f32 %v337, %v429
      %431 = vmatmul.f32.gmra.mxu0 %v368
      %v432 = vpop.f32.mrf.mxu0
      %v433 = vadd.f32 %v337, %v432
      %434 = vmatmul.f32.gmra.mxu0 %v371
      %v435 = vpop.f32.mrf.mxu0
      %v436 = vadd.f32 %v337, %v435
      %437 = vmatmul.f32.gmra.mxu0 %v374
      %v438 = vpop.f32.mrf.mxu0
      %v439 = vadd.f32 %v337, %v438
      %440 = vmatmul.f32.gmra.mxu0 %v377
      %v441 = vpop.f32.mrf.mxu0
      %v442 = vadd.f32 %v337, %v441
      %443 = vmatmul.f32.gmra.mxu0 %v380
      %v444 = vpop.f32.mrf.mxu0
      %v445 = vadd.f32 %v337, %v444
      %446 = vmatmul.f32.gmra.mxu0 %v383
      %v447 = vpop.f32.mrf.mxu0
      %v448 = vadd.f32 %v337, %v447
      %449 = vmatmul.f32.gmra.mxu0 %v386
      %v450 = vpop.f32.mrf.mxu0
      %v451 = vadd.f32 %v337, %v450
      %452 = vdwg.mxu0
      %v453 = vld [vmem:[%s2] sm:$0xff]
      %v454 = vld [vmem:[%s2 + $0x8] sm:$0xff]
      %v455 = vld [vmem:[%s2 + $0x10] sm:$0xff]
      %v456 = vld [vmem:[%s2 + $0x18] sm:$0xff]
      %v457 = vld [vmem:[%s4] sm:$0x1]
      %v459 = vperm.slane %v457, 0
      %461 = vmatpush.msra.mxu0 0.0
      %462 = vmatpush.msra.mxu0 0.0
      %463 = vmatpush.msra.mxu0 0.0
      %464 = vmatpush.msra.mxu0 0.0
      %465 = vmatpush.msra.mxu0 0.0
      %466 = vmatpush.msra.mxu0 0.0
      %467 = vmatpush.msra.mxu0 0.0
      %468 = vmatpush.msra.mxu0 0.0
      %469 = vmatpush.msra.mxu0 0.0
      %470 = vmatpush.msra.mxu0 0.0
      %471 = vmatpush.msra.mxu0 0.0
      %472 = vmatpush.msra.mxu0 0.0
      %473 = vmatpush.msra.mxu0 %v456
      %474 = vmatpush.msra.mxu0 %v455
      %475 = vmatpush.msra.mxu0 %v454
      %476 = vmatpush.msra.mxu0 %v453
      %477 = vmatmul.f32.gmra.mxu0 %v341
      %v478 = vpop.f32.mrf.mxu0
      %v479 = vadd.f32 %v459, %v478
      %480 = vmatmul.f32.gmra.mxu0 %v344
      %v481 = vpop.f32.mrf.mxu0
      %v482 = vadd.f32 %v459, %v481
      %483 = vmatmul.f32.gmra.mxu0 %v347
      %v484 = vpop.f32.mrf.mxu0
      %v485 = vadd.f32 %v459, %v484
      %486 = vmatmul.f32.gmra.mxu0 %v350
      %v487 = vpop.f32.mrf.mxu0
      %v488 = vadd.f32 %v459, %v487
      %489 = vmatmul.f32.gmra.mxu0 %v353
      %v490 = vpop.f32.mrf.mxu0
      %v491 = vadd.f32 %v459, %v490
      %492 = vmatmul.f32.gmra.mxu0 %v356
      %v493 = vpop.f32.mrf.mxu0
      %v494 = vadd.f32 %v459, %v493
      %495 = vmatmul.f32.gmra.mxu0 %v359
      %v496 = vpop.f32.mrf.mxu0
      %v497 = vadd.f32 %v459, %v496
      %498 = vmatmul.f32.gmra.mxu0 %v362
      %v499 = vpop.f32.mrf.mxu0
      %v500 = vadd.f32 %v459, %v499
      %501 = vmatmul.f32.gmra.mxu0 %v365
      %v502 = vpop.f32.mrf.mxu0
      %v503 = vadd.f32 %v459, %v502
      %504 = vmatmul.f32.gmra.mxu0 %v368
      %v505 = vpop.f32.mrf.mxu0
      %v506 = vadd.f32 %v459, %v505
      %507 = vmatmul.f32.gmra.mxu0 %v371
      %v508 = vpop.f32.mrf.mxu0
      %v509 = vadd.f32 %v459, %v508
      %510 = vmatmul.f32.gmra.mxu0 %v374
      %v511 = vpop.f32.mrf.mxu0
      %v512 = vadd.f32 %v459, %v511
      %513 = vmatmul.f32.gmra.mxu0 %v377
      %v514 = vpop.f32.mrf.mxu0
      %v515 = vadd.f32 %v459, %v514
      %516 = vmatmul.f32.gmra.mxu0 %v380
      %v517 = vpop.f32.mrf.mxu0
      %v518 = vadd.f32 %v459, %v517
      %519 = vmatmul.f32.gmra.mxu0 %v383
      %v520 = vpop.f32.mrf.mxu0
      %v521 = vadd.f32 %v459, %v520
      %522 = vmatmul.f32.gmra.mxu0 %v386
      %v523 = vpop.f32.mrf.mxu0
      %v524 = vadd.f32 %v459, %v523
      %525 = vdwg.mxu0
      %vm526 = vcmask 31744
      %527 = vst.msk [vmem:[%s303] sm:$0xff] %vm526, %v406
      %528 = vst.msk [vmem:[%s303 + $0x8] sm:$0xff] %vm526, %v409
      %529 = vst.msk [vmem:[%s303 + $0x10] sm:$0xff] %vm526, %v412
      %530 = vst.msk [vmem:[%s303 + $0x18] sm:$0xff] %vm526, %v415
      %531 = vst.msk [vmem:[%s303 + $0x20] sm:$0xff] %vm526, %v418
      %532 = vst.msk [vmem:[%s303 + $0x28] sm:$0xff] %vm526, %v421
      %533 = vst.msk [vmem:[%s303 + $0x30] sm:$0xff] %vm526, %v424
      %534 = vst.msk [vmem:[%s303 + $0x38] sm:$0xff] %vm526, %v427
      %535 = vst.msk [vmem:[%s303 + $0x40] sm:$0xff] %vm526, %v430
      %536 = vst.msk [vmem:[%s303 + $0x48] sm:$0xff] %vm526, %v433
      %537 = vst.msk [vmem:[%s303 + $0x50] sm:$0xff] %vm526, %v436
      %538 = vst.msk [vmem:[%s303 + $0x58] sm:$0xff] %vm526, %v439
      %539 = vst.msk [vmem:[%s303 + $0x60] sm:$0xff] %vm526, %v442
      %540 = vst.msk [vmem:[%s303 + $0x68] sm:$0xff] %vm526, %v445
      %541 = vst.msk [vmem:[%s303 + $0x70] sm:$0xff] %vm526, %v448
      %542 = vst.msk [vmem:[%s303 + $0x78] sm:$0xff] %vm526, %v451
      %543 = vst.msk [vmem:[%s313] sm:$0xff] %vm526, %v479
      %544 = vst.msk [vmem:[%s313 + $0x8] sm:$0xff] %vm526, %v482
      %545 = vst.msk [vmem:[%s313 + $0x10] sm:$0xff] %vm526, %v485
      %546 = vst.msk [vmem:[%s313 + $0x18] sm:$0xff] %vm526, %v488
      %547 = vst.msk [vmem:[%s313 + $0x20] sm:$0xff] %vm526, %v491
      %548 = vst.msk [vmem:[%s313 + $0x28] sm:$0xff] %vm526, %v494
      %549 = vst.msk [vmem:[%s313 + $0x30] sm:$0xff] %vm526, %v497
      %550 = vst.msk [vmem:[%s313 + $0x38] sm:$0xff] %vm526, %v500
      %551 = vst.msk [vmem:[%s313 + $0x40] sm:$0xff] %vm526, %v503
      %552 = vst.msk [vmem:[%s313 + $0x48] sm:$0xff] %vm526, %v506
      %553 = vst.msk [vmem:[%s313 + $0x50] sm:$0xff] %vm526, %v509
      %554 = vst.msk [vmem:[%s313 + $0x58] sm:$0xff] %vm526, %v512
      %555 = vst.msk [vmem:[%s313 + $0x60] sm:$0xff] %vm526, %v515
      %556 = vst.msk [vmem:[%s313 + $0x68] sm:$0xff] %vm526, %v518
      %557 = vst.msk [vmem:[%s313 + $0x70] sm:$0xff] %vm526, %v521
      %558 = vst.msk [vmem:[%s313 + $0x78] sm:$0xff] %vm526, %v524
      %s559 = smul.u32 16, %s23
      %p560 = scmp.lt.s32.totalorder %s22, 1
      %s561 = scalar_select %p560, %s22, 1
      %p562 = scmp.lt.s32.totalorder %s559, 15
      %s563 = scalar_select %p562, %s559, 15
      %s564 = smul.addr %s561, 16
      %s565 = sadd.s32 %s563, %s564
      %s566 = smul.addr %s565, 8
      %s567 = scalar_lea.vmem %s5, %s566
      %s568 = smul.u32 16, %s23
      %p569 = scmp.lt.s32.totalorder %s22, 1
      %s570 = scalar_select %p569, %s22, 1
      %p571 = scmp.lt.s32.totalorder %s568, 15
      %s572 = scalar_select %p571, %s568, 15
      %s573 = smul.addr %s570, 16
      %s574 = sadd.s32 %s572, %s573
      %s575 = smul.addr %s574, 8
      %s576 = scalar_lea.vmem %s6, %s575
      // Predicated region
      $region41: #{tpu_custom_call.1} parent=39 // pred_check
        %p577 = pneg %p162
      $region42: #{tpu_custom_call.1} parent=39 // pred_check_branch
        %579 = sbr.rel (%p577) target = $region44
      $region43: #{tpu_custom_call.1} parent=39 // pred_region
        %s580 = smul.u32 16, %s23
      $region44: #{tpu_custom_call.1} parent=39 // pred_fallthru
        _
      // Predicated region
      $region45: #{tpu_custom_call.1} parent=39 // pred_check
        %p581 = pneg %p190
      $region46: #{tpu_custom_call.1} parent=39 // pred_check_branch
        %583 = sbr.rel (%p581) target = $region48
      $region47: #{tpu_custom_call.1} parent=39 // pred_region
        %s584 = smul.u32 16, %s23
      $region48: #{tpu_custom_call.1} parent=39 // pred_fallthru
        _
    $region40: #{tpu_custom_call.1} parent=5 // pred_fallthru
      _
    %p585 = scmp.le.s32.totalorder 2, %s13
    // Predicated region
    $region49: #{tpu_custom_call.1} parent=5 // pred_check
      %p586 = pneg %p585
    $region50: #{tpu_custom_call.1} parent=5 // pred_check_branch
      %588 = sbr.rel (%p586) target = $region52
    $region51: #{tpu_custom_call.1} parent=5 // pred_region
      %s589 = ssub.s32 %s13, 2
      // Predicated region
      $region53: #{tpu_custom_call.1} parent=51 // pred_check
        %p590 = pneg %p168
      $region54: #{tpu_custom_call.1} parent=51 // pred_check_branch
        %592 = sbr.rel (%p590) target = $region56
      $region55: #{tpu_custom_call.1} parent=51 // pred_region
        %s593 = smul.u32 16, %s25
        %p594 = scmp.lt.s32.totalorder %s24, 1
        %s595 = scalar_select %p594, %s24, 1
        %p596 = scmp.lt.s32.totalorder %s593, 15
        %s597 = scalar_select %p596, %s593, 15
        %s598 = smul.addr %s595, 16
        %s599 = sadd.s32 %s597, %s598
        %s600 = smul.addr %s599, 8
        %s601 = scalar_lea.vmem %s5, %s600
      $region56: #{tpu_custom_call.1} parent=51 // pred_fallthru
        _
      // Predicated region
      $region57: #{tpu_custom_call.1} parent=51 // pred_check
        %p602 = pneg %p196
      $region58: #{tpu_custom_call.1} parent=51 // pred_check_branch
        %604 = sbr.rel (%p602) target = $region60
      $region59: #{tpu_custom_call.1} parent=51 // pred_region
        %s605 = smul.u32 16, %s25
        %p606 = scmp.lt.s32.totalorder %s24, 1
        %s607 = scalar_select %p606, %s24, 1
        %p608 = scmp.lt.s32.totalorder %s605, 15
        %s609 = scalar_select %p608, %s605, 15
        %s610 = smul.addr %s607, 16
        %s611 = sadd.s32 %s609, %s610
        %s612 = smul.addr %s611, 8
        %s613 = scalar_lea.vmem %s6, %s612
      $region60: #{tpu_custom_call.1} parent=51 // pred_fallthru
        _
    $region52: #{tpu_custom_call.1} parent=5 // pred_fallthru
      _
  $region6: #{tpu_custom_call.1} parent=0 // loop_footer
    %s17 = sadd.s32 1, %s13
  $region7: #{tpu_custom_call.1} parent=0 // loop_footer_branch
    %12 = sbr.rel target = $region3
  $region8: #{tpu_custom_call.1} parent=0 // loop_exit
    _

</llo_original>
